<compile_context>
chip_gen: v6e
topology: v6e:2x2x1
jax: 0.10.0
libtpu: 0.0.40
codegen_flags: <defaults>
</compile_context>

<pallas_src>
import functools

import jax
import jax.numpy as jnp
import numpy as np
from jax.experimental import pallas as pl
from jax.experimental.pallas import tpu as pltpu

_GAMMA_RELU = 1.7139588594436646   # NFNet non-linearity gamma for 'relu'


# --------------------------------------------------------------------------- #
# Kernel 1: global average pool (HBM-read-bound).
# x viewed as (R, L), R = B*C rows (sublanes), L = H*W (lanes).
# Grid = (row blocks [parallel], spatial chunks [arbitrary/reduction]).
# The (rb, 1) output block is revisited across the reduction axis, so it acts
# as a VMEM-resident f32 accumulator (initialised at k == 0).
# --------------------------------------------------------------------------- #
def _pool_kernel(x_ref, sum_ref):
    @pl.when(pl.program_id(1) == 0)
    def _():
        sum_ref[...] = jnp.zeros_like(sum_ref)

    # f32 accumulation regardless of the (possibly bf16) input dtype.
    sum_ref[...] += jnp.sum(x_ref[...].astype(jnp.float32), axis=-1, keepdims=True)


# --------------------------------------------------------------------------- #
# Kernel 2: tiny squeeze/excite MLP on the pooled (B, C) vector.
# Single un-gridded call; all operands comfortably fit in VMEM.
# --------------------------------------------------------------------------- #
def _fc_kernel(psum_ref, w0t_ref, b0_ref, w1t_ref, b1_ref, out_ref, *, inv_l):
    pooled = psum_ref[...] * inv_l                                        # mean, (B, C)
    h0 = jnp.dot(pooled, w0t_ref[...], preferred_element_type=jnp.float32) + b0_ref[...]
    a = jnp.maximum(h0, 0.0) * _GAMMA_RELU                                # scaled ReLU
    h1 = jnp.dot(a, w1t_ref[...], preferred_element_type=jnp.float32) + b1_ref[...]
    out_ref[...] = h1.astype(out_ref.dtype)


# --------------------------------------------------------------------------- #
# Per-chip tile planning.
# --------------------------------------------------------------------------- #
def _vmem_capacity_bytes():
    """Physical VMEM per TensorCore; conservative fallback if unqueryable."""
    try:
        cap = getattr(pltpu.get_tpu_info(), "vmem_capacity_bytes", None)
        if cap:
            return int(cap)
    except Exception:
        pass
    return 64 << 20   # v7x per-core size: safe lower bound across current chips


def _largest_divisor(n, cap, multiple_of):
    """Largest d with d | n, d <= cap and d % multiple_of == 0, or None."""
    best = None
    i = 1
    while i * i <= n:
        if n % i == 0:
            for d in (i, n // i):
                if d <= cap and d % multiple_of == 0 and (best is None or d > best):
                    best = d
        i += 1
    return best


def _plan_pool_tiles(R, L, itemsize, want_min_row_blocks=2):
    """Pick (row_block, spatial_block, vmem_limit_bytes) for the pool kernel."""
    cap = _vmem_capacity_bytes()
    # One x block ~ cap/4: with 2x double-buffering that is ~cap/2 resident for
    # x, leaving the rest for the tiny accumulator/output blocks and compiler
    # scratch.  -> ~32 MiB blocks on v5e/v6e (128 MiB VMEM), ~16 MiB on v7x (64 MiB).
    budget_elems = max((cap // 4) // itemsize, 8 * 128)

    # Spatial (lane, reduction) axis: keep the full row when even an 8-row block
    # fits; otherwise chop L into multiple-of-128 chunks (trailing grid axis).
    min_rows = 8 if (R % 8 == 0 and R >= 8) else R
    if min_rows * L <= budget_elems or L % 128 != 0:
        tl = L
    else:
        tl = _largest_divisor(L, max(budget_elems // min_rows, 128), 128) or L
        # TODO(synk): masked/ragged L tiles for huge rows with no 128-multiple divisor.

    # Row (sublane) axis: biggest multiple-of-8 divisor of R within the budget,
    # but keep >= 2 row blocks when possible so the "parallel" axis can shard
    # across v7x's two TensorCores (the extra ~0.35us grid step is noise on
    # single-TensorCore v5e/v6e for this mem-bound kernel).
    if R % 8 != 0:
        rb = R
    else:
        cap_rows = max(budget_elems // tl, 8)
        if R >= 8 * want_min_row_blocks:
            cap_rows = min(cap_rows, R // want_min_row_blocks)
        cap_rows = max((cap_rows // 8) * 8, 8)
        rb = _largest_divisor(R, cap_rows, 8) or R

    x_block_bytes = rb * tl * itemsize
    resident = 2 * x_block_bytes + 2 * rb * 4 + (4 << 20)   # x dbl-buf + out blocks + slack
    vmem_limit = int(min(int(0.9 * cap), max(resident, 16 << 20)))
    return rb, tl, vmem_limit


# --------------------------------------------------------------------------- #
# Wrapper
# --------------------------------------------------------------------------- #
def squeeze_excite(x, w0, b0, w1, b1):
    """x: (B, C, H, W). w0: (hidden, C), b0: (hidden,), w1: (out, hidden), b1: (out,)."""
    B, C, H, W = x.shape
    hidden = w0.shape[0]
    out_c = w1.shape[0]
    # torch expand_as: h (B, out) aligns with the trailing (H, W) dims of x.
    assert (B == H or B == 1) and (out_c == W or out_c == 1), \
        "h.expand_as(x) requires B==H (or B==1) and out_channels==W (or ==1)"

    R, L = B * C, H * W
    x2d = jnp.reshape(x, (R, L))            # free view for contiguous NCHW; keeps native dtype

    itemsize = jnp.dtype(x.dtype).itemsize
    rb, tl, vmem_limit = _plan_pool_tiles(R, L, itemsize)
    grid = (R // rb, L // tl)

    pooled_sum = pl.pallas_call(
        _pool_kernel,
        out_shape=jax.ShapeDtypeStruct((R, 1), jnp.float32),
        grid=grid,
        in_specs=[pl.BlockSpec((rb, tl), lambda i, k: (i, k))],
        out_specs=pl.BlockSpec((rb, 1), lambda i, k: (i, 0)),
        compiler_params=pltpu.CompilerParams(
            dimension_semantics=("parallel", "arbitrary"),
            vmem_limit_bytes=vmem_limit,
        ),
        cost_estimate=pl.CostEstimate(
            flops=R * L,
            transcendentals=0,
            bytes_accessed=R * L * itemsize + R * 4,
        ),
    )(x2d)

    # Tiny glue on tiny data: (B*C, 1) -> (B, C); weights pre-transposed once;
    # biases as (1, N) row vectors for TPU layout.
    pooled_bc = jnp.reshape(pooled_sum, (B, C))
    w0t = jnp.asarray(w0, jnp.float32).T                     # (C, hidden)
    w1t = jnp.asarray(w1, jnp.float32).T                     # (hidden, out)
    b0_2d = jnp.asarray(b0, jnp.float32).reshape(1, hidden)
    b1_2d = jnp.asarray(b1, jnp.float32).reshape(1, out_c)

    h1 = pl.pallas_call(
        functools.partial(_fc_kernel, inv_l=1.0 / float(L)),
        out_shape=jax.ShapeDtypeStruct((B, out_c), jnp.float32),
        cost_estimate=pl.CostEstimate(
            flops=2 * B * (C * hidden + hidden * out_c),
            transcendentals=0,
            bytes_accessed=4 * (B * C + C * hidden + hidden
                                + hidden * out_c + out_c + B * out_c),
        ),
    )(pooled_bc, w0t, b0_2d, w1t, b1_2d)

    # expand_as(x): out[b, c, i, j] = h1[i, j] — pure replication; let XLA stream it.
    return jnp.broadcast_to(h1[None, None, :, :], (B, C, H, W)).astype(x.dtype)


def squeeze_excite_ref(x, w0, b0, w1, b1):
    """Pure-JAX reference of the PyTorch forward (f32 math)."""
    pooled = jnp.mean(x.astype(jnp.float32), axis=(2, 3))     # (B, C)
    h0 = pooled @ jnp.asarray(w0, jnp.float32).T + b0
    a = jnp.maximum(h0, 0.0) * _GAMMA_RELU
    h1 = a @ jnp.asarray(w1, jnp.float32).T + b1
    return jnp.broadcast_to(h1[None, None, :, :], x.shape)


if __name__ == "__main__":
    # Shapes consistent with the module + expand_as constraint:
    #   in_channels = C = 4, se_ratio = 0.5 -> hidden = max(1, 2) = 2
    #   B = H = 16, out_channels = W = 16
    B, C, H, W = 16, 4, 16, 16
    in_channels, hidden_channels, out_channels = C, 2, W

    key = jax.random.PRNGKey(0)
    kx, kw0, kb0, kw1, kb1 = jax.random.split(key, 5)

    x = jax.random.normal(kx, (B, C, H, W), dtype=jnp.float32)

    # Deterministic Linear-style init (uniform in +/- 1/sqrt(fan_in)).
    bound0 = 1.0 / np.sqrt(in_channels)
    w0 = jax.random.uniform(kw0, (hidden_channels, in_channels), jnp.float32, -bound0, bound0)
    b0 = jax.random.uniform(kb0, (hidden_channels,), jnp.float32, -bound0, bound0)
    bound1 = 1.0 / np.sqrt(hidden_channels)
    w1 = jax.random.uniform(kw1, (out_channels, hidden_channels), jnp.float32, -bound1, bound1)
    b1 = jax.random.uniform(kb1, (out_channels,), jnp.float32, -bound1, bound1)

    # f32 path (parity with the PyTorch module).
    out = jax.block_until_ready(squeeze_excite(x, w0, b0, w1, b1))
    ref = squeeze_excite_ref(x, w0, b0, w1, b1)
    np.testing.assert_allclose(np.asarray(out), np.asarray(ref), rtol=1e-5, atol=1e-5)

    # bf16 path: x stays bf16 in HBM (half the read traffic), f32 accumulation in-kernel.
    x_bf16 = x.astype(jnp.bfloat16)
    out_bf16 = jax.block_until_ready(squeeze_excite(x_bf16, w0, b0, w1, b1))
    ref_bf16 = squeeze_excite_ref(x_bf16, w0, b0, w1, b1)
    np.testing.assert_allclose(np.asarray(out_bf16.astype(jnp.float32)),
                               np.asarray(ref_bf16), rtol=2e-2, atol=2e-2)

    print("KERNEL_OK")
</pallas_src>

<mosaic_0001>
module attributes {stable_mosaic.version = 11 : i64} {
  func.func @_pool_kernel(%arg0: i32, %arg1: i32, %arg2: memref<32x256xf32, #tpu.memory_space<vmem>>, %arg3: memref<32x1xf32, #tpu.memory_space<vmem>>) attributes {dimension_semantics = [#tpu.dimension_semantics<parallel>, #tpu.dimension_semantics<arbitrary>], iteration_bounds = array<i64: 2, 1>, scalar_prefetch = 0 : i64, scratch_operands = 0 : i64, tpu.core_type = #tpu.core_type<tc>, window_params = [{transform_indices = @transform_0, window_bounds = array<i64: 32, 256>}, {transform_indices = @transform_1, window_bounds = array<i64: 32, 1>}]} {
    %c0_i32 = arith.constant 0 : i32
    %0 = arith.cmpi eq, %arg1, %c0_i32 : i32
    %1 = arith.extui %0 : i1 to i32
    %c0_i32_0 = arith.constant 0 : i32
    %2 = arith.cmpi ne, %1, %c0_i32_0 : i32
    scf.if %2 {
      %cst_6 = arith.constant 0.000000e+00 : f32
      %9 = vector.broadcast %cst_6 : f32 to vector<32x1xf32>
      %c0_7 = arith.constant 0 : index
      %c0_8 = arith.constant 0 : index
      %10 = vector.load %arg3[%c0_7, %c0_8] : memref<32x1xf32, #tpu.memory_space<vmem>>, vector<32x1xf32>
      tpu.vector_store %arg3[%c0_7, %c0_8], %9 {strides = array<i32>} : memref<32x1xf32, #tpu.memory_space<vmem>>, vector<32x1xf32>,
    } else {
    }
    %c0 = arith.constant 0 : index
    %c0_1 = arith.constant 0 : index
    %3 = vector.load %arg3[%c0, %c0_1] : memref<32x1xf32, #tpu.memory_space<vmem>>, vector<32x1xf32>
    %c0_2 = arith.constant 0 : index
    %c0_3 = arith.constant 0 : index
    %4 = vector.load %arg2[%c0_2, %c0_3] : memref<32x256xf32, #tpu.memory_space<vmem>>, vector<32x256xf32>
    %cst = arith.constant dense<0.000000e+00> : vector<32xf32>
    %5 = vector.multi_reduction <add>, %4, %cst [1] : vector<32x256xf32> to vector<32xf32>
    %6 = vector.shape_cast %5 : vector<32xf32> to vector<32x1xf32>
    %7 = arith.addf %3, %6 : vector<32x1xf32>
    %c0_4 = arith.constant 0 : index
    %c0_5 = arith.constant 0 : index
    %8 = vector.load %arg3[%c0_4, %c0_5] : memref<32x1xf32, #tpu.memory_space<vmem>>, vector<32x1xf32>
    tpu.vector_store %arg3[%c0_4, %c0_5], %7 {strides = array<i32>} : memref<32x1xf32, #tpu.memory_space<vmem>>, vector<32x1xf32>,
    return
  }
  func.func @transform_0(%arg0: i32, %arg1: i32) -> (i32, i32) {
    %c0_i32 = arith.constant 0 : i32
    return %arg0, %arg1 : i32, i32
  }
  func.func @transform_1(%arg0: i32, %arg1: i32) -> (i32, i32) {
    %c0_i32 = arith.constant 0 : i32
    %c0_i32_0 = arith.constant 0 : i32
    return %arg0, %c0_i32 : i32, i32
  }
}

</mosaic_0001>

<llo_original>
// kernel: tpu_custom_call.1
$region0: #{tpu_custom_call.1}
  #allocation0 [shape = 'u32[]', space=smem, size = 0x4, offset = 0x4, fixed_abs, tag = 'smem constant byte address 0x4 - core index']
  #allocation1 [shape = 'u32[144,128]{1,0:T(1,128)}', space=vmem, size = 0x12000, scoped, tag = 'internal scratch']
  %s0 = inlined_call_operand.hbm [shape: f32[64,256], index: 0, kind: input, shape index: {}]
  %s1 = inlined_call_operand.vmem [shape: f32[64,1], index: 1, kind: output, shape index: {}]
  %s2 = sld [smem:[#allocation0]]
  $region45: #{tpu_custom_call.1} parent=0
    _
  %s4 = ssub.s32 1, %s2
  %s5 = scalar_select 0, %s4, %s2
  $region1: #{tpu_custom_call.1} parent=0
    #allocation2 [shape = 'u8[65536]{0}', space=vmem, size = 0x10000, scoped, tag = 'input window, operand 0']
    #allocation3 [shape = 's32[2]{0}', space=sflag, size = 0x8, scoped, tag = 'scoped memory for tpu_custom_call.1']
    %6 = vsyncpa [#allocation3], 0
    %s7 = scalar_lea.sflag [#allocation3], 1
    %8 = vsyncpa %s7, 0
    loop: start=0, step=1, limit=4
    $region2: #{tpu_custom_call.1} parent=1 // loop_pre_header
      _
    $region3: #{tpu_custom_call.1} parent=1 // loop_header
      %s10 = sphi 0, %s14
      %p11 = scmp.ge.s32.totalorder %s10, 4
      %s17 = sphi 0, %s29
      %s18 = sphi 0, %s25
      %s19 = sphi 0, %s17
      %s20 = sphi 0, %s18
      %s21 = sphi 0, %s19
      %s22 = sphi 0, %s20
      %s34 = sphi 0, %s36
      %s37 = sphi 0, %s34
      %s38 = sphi 0, %s37
      %s54 = sphi 0, %s38
      %s60 = sphi 0, %s62
      %s63 = sphi 0, %s60
      %s64 = sphi 0, %s63
      %s80 = sphi 0, %s64
    $region4: #{tpu_custom_call.1} parent=1 // loop_header_branch
      %13 = sbr.rel (%p11) target = $region8
    $region5: #{tpu_custom_call.1} parent=1 // loop_body
      %s15 = ssub.s32 %s10, 1
      %s16 = ssub.s32 %s10, 2
      %s23 = sadd.s32 1, %s18
      %p24 = scmp.ge.s32.totalorder %s23, 1
      %s25 = scalar_select %p24, 0, %s23
      %s26 = sadd.s32 1, %s17
      %s27 = scalar_select %p24, %s26, %s17
      %p28 = scmp.ge.s32.totalorder %s27, 2
      %s29 = scalar_select %p28, 0, %s27
      %s30 = ssub.s32 %s17, %s29
      %s31 = ssub.s32 %s18, %s25
      %s32 = sor.u32 %s30, %s31
      %p33 = scmp.eq.s32.totalorder %s32, 0
      %s35 = sadd.s32 %s34, 1
      %s36 = scalar_select %p33, %s34, %s35
      %p39 = pneg %p33
      %p40 = scmp.eq.s32.totalorder %s10, 1
      %p41 = por %p39, %p40
      %p42 = scmp.ne.s32.totalorder %s34, %s37
      %p43 = scmp.eq.s32.totalorder %s10, 0
      %p44 = por %p42, %p43
      %p45 = scmp.ne.s32.totalorder %s34, %s37
      %p46 = scmp.eq.s32.totalorder %s15, 1
      %p47 = por %p45, %p46
      %p48 = scmp.ne.s32.totalorder %s37, %s38
      %p49 = scmp.eq.s32.totalorder %s15, 0
      %p50 = por %p48, %p49
      %p51 = scmp.ne.s32.totalorder %s37, %s38
      %p52 = scmp.eq.s32.totalorder %s16, 1
      %p53 = por %p51, %p52
      %p55 = scmp.ne.s32.totalorder %s38, %s54
      %p56 = scmp.eq.s32.totalorder %s16, 0
      %p57 = por %p55, %p56
      %s58 = ssub.s32 %s17, %s29
      %p59 = scmp.eq.s32.totalorder %s58, 0
      %s61 = sadd.s32 %s60, 1
      %s62 = scalar_select %p59, %s60, %s61
      %p65 = pneg %p59
      %p66 = scmp.eq.s32.totalorder %s10, 1
      %p67 = por %p65, %p66
      %p68 = scmp.ne.s32.totalorder %s60, %s63
      %p69 = scmp.eq.s32.totalorder %s10, 0
      %p70 = por %p68, %p69
      %p71 = scmp.ne.s32.totalorder %s60, %s63
      %p72 = scmp.eq.s32.totalorder %s15, 1
      %p73 = por %p71, %p72
      %p74 = scmp.ne.s32.totalorder %s63, %s64
      %p75 = scmp.eq.s32.totalorder %s15, 0
      %p76 = por %p74, %p75
      %p77 = scmp.ne.s32.totalorder %s63, %s64
      %p78 = scmp.eq.s32.totalorder %s16, 1
      %p79 = por %p77, %p78
      %p81 = scmp.ne.s32.totalorder %s64, %s80
      %p82 = scmp.eq.s32.totalorder %s16, 0
      %p83 = por %p81, %p82
      %p84 = scmp.le.s32.totalorder 1, %s10
      %p85 = scmp.lt.s32.totalorder %s10, 3
      %p86 = pnand %p84, %p85
      %p87 = pneg %p86
      // Predicated region
      $region9: #{tpu_custom_call.1} parent=5 // pred_check
        _
      $region10: #{tpu_custom_call.1} parent=5 // pred_check_branch
        %89 = sbr.rel (%p86) target = $region12
      $region11: #{tpu_custom_call.1} parent=5 // pred_region
        %s90 = ssub.s32 %s10, 1
      $region12: #{tpu_custom_call.1} parent=5 // pred_fallthru
        _
      %p91 = scmp.lt.s32.totalorder %s10, 2
      // Predicated region
      $region13: #{tpu_custom_call.1} parent=5 // pred_check
        %p92 = pneg %p91
      $region14: #{tpu_custom_call.1} parent=5 // pred_check_branch
        %94 = sbr.rel (%p92) target = $region16
      $region15: #{tpu_custom_call.1} parent=5 // pred_region
        // Predicated region
        $region17: #{tpu_custom_call.1} parent=15 // pred_check
          %p95 = pneg %p44
        $region18: #{tpu_custom_call.1} parent=15 // pred_check_branch
          %97 = sbr.rel (%p95) target = $region20
        $region19: #{tpu_custom_call.1} parent=15 // pred_region
          %s98 = sand.u32 %s34, 1
          %s99 = scalar_lea.sflag [#allocation3], %s98
          %s100 = sand.u32 %s34, 1
          %s101 = smul.addr %s100, 64
          %s102 = scalar_lea.vmem [#allocation2], %s101
          %s103 = smul.u32 4, %s17
          %s104 = smul.u32 2, %s18
          %s106 = ssub.s32 1024, 1024
          %107 = vsyncadd %s99, %s106
          %s108 = smul.addr %s103, 2
          %s109 = sadd.s32 %s104, %s108
          %s110 = smul.addr %s109, 128
          %s111 = scalar_lea.hbm %s0, %s110
          %s112 = sshll.u32 %s102, 4
          %s113 = int_to_ptr.vmem [resolvable:$true] %s112
          %118 = dma.hbm_to_vmem [thread:$0]  %s111, 1024, %s113, %s99, 256, 256, 16
        $region20: #{tpu_custom_call.1} parent=15 // pred_fallthru
          _
      $region16: #{tpu_custom_call.1} parent=5 // pred_fallthru
        _
      %p119 = scmp.le.s32.totalorder 1, %s10
      %p120 = scmp.lt.s32.totalorder %s10, 3
      %p121 = pnand %p119, %p120
      %p122 = pneg %p121
      // Predicated region
      $region21: #{tpu_custom_call.1} parent=5 // pred_check
        _
      $region22: #{tpu_custom_call.1} parent=5 // pred_check_branch
        %124 = sbr.rel (%p121) target = $region24
      $region23: #{tpu_custom_call.1} parent=5 // pred_region
        %s125 = ssub.s32 %s10, 1
        %s126 = sand.u32 %s37, 1
        %s127 = scalar_lea.sflag [#allocation3], %s126
        %s128 = sand.u32 %s37, 1
        %s129 = smul.addr %s128, 64
        %s130 = scalar_lea.vmem [#allocation2], %s129
        // Predicated region
        $region25: #{tpu_custom_call.1} parent=23 // pred_check
          %p131 = pneg %p50
        $region26: #{tpu_custom_call.1} parent=23 // pred_check_branch
          %133 = sbr.rel (%p131) target = $region28
        $region27: #{tpu_custom_call.1} parent=23 // pred_region
          %134 = dma.done %s127, 1024
        $region28: #{tpu_custom_call.1} parent=23 // pred_fallthru
          _
        %s135 = sand.u32 %s37, 1
        %s136 = scalar_lea.sflag [#allocation3], %s135
        %s137 = sand.u32 %s37, 1
        %s138 = smul.addr %s137, 64
        %s139 = scalar_lea.vmem [#allocation2], %s138
        %p140 = pneg %p50
        %p141 = pneg %p47
        %p142 = pneg %p76
        %p143 = pneg %p73
        %s144 = smul.u32 4, %s19
        %p145 = scmp.lt.s32.totalorder %s144, 7
        %s146 = scalar_select %p145, %s144, 7
        %s147 = smul.addr %s146, 8
        %s148 = scalar_lea.vmem %s1, %s147
        %s149 = smul.u32 4, %s19
        %s150 = smul.u32 2, %s20
        %s151 = smul.u32 4, %s19
        %p152 = scmp.lt.s32.totalorder %s151, 7
        %s153 = scalar_select %p152, %s151, 7
        %s154 = smul.addr %s153, 8
        %s155 = scalar_lea.vmem %s1, %s154
        %s156 = smul.u32 4, %s19
        %p157 = scmp.eq.s32.totalorder %s20, 0
        // Predicated region
        $region29: #{tpu_custom_call.1} parent=23 // pred_check
          %p158 = pneg %p157
        $region30: #{tpu_custom_call.1} parent=23 // pred_check_branch
          %160 = sbr.rel (%p158) target = $region32
        $region31: #{tpu_custom_call.1} parent=23 // pred_region
          %vm161 = vcmask 7168
          %162 = vst.msk [vmem:[%s155] sm:$0xff] %vm161, 0.0
          %163 = vst.msk [vmem:[%s155 + $0x8] sm:$0xff] %vm161, 0.0
          %164 = vst.msk [vmem:[%s155 + $0x10] sm:$0xff] %vm161, 0.0
          %165 = vst.msk [vmem:[%s155 + $0x18] sm:$0xff] %vm161, 0.0
        $region32: #{tpu_custom_call.1} parent=23 // pred_fallthru
          _
        %v166 = vld [vmem:[%s155] sm:$0xff]
        %v167 = vld [vmem:[%s155 + $0x8] sm:$0xff]
        %v168 = vld [vmem:[%s155 + $0x10] sm:$0xff]
        %v169 = vld [vmem:[%s155 + $0x18] sm:$0xff]
        %v170 = vld [vmem:[%s130] sm:$0xff]
        %v171 = vld [vmem:[%s130 + $0x8] sm:$0xff]
        %v172 = vld [vmem:[%s130 + $0x10] sm:$0xff]
        %v173 = vld [vmem:[%s130 + $0x18] sm:$0xff]
        %v174 = vld [vmem:[%s130 + $0x20] sm:$0xff]
        %v175 = vld [vmem:[%s130 + $0x28] sm:$0xff]
        %v176 = vld [vmem:[%s130 + $0x30] sm:$0xff]
        %v177 = vld [vmem:[%s130 + $0x38] sm:$0xff]
        %v178 = vadd.f32 %v170, %v171
        %179 = vadd.xlane.f32.xlu0 %v178
        %v180 = vpop.xlane.xlu0 %179
        %v181 = vadd.f32 %v172, %v173
        %182 = vadd.xlane.f32.xlu0 %v181
        %v183 = vpop.xlane.xlu0 %182
        %v184 = vadd.f32 %v174, %v175
        %185 = vadd.xlane.f32.xlu0 %v184
        %v186 = vpop.xlane.xlu0 %185
        %v187 = vadd.f32 %v176, %v177
        %188 = vadd.xlane.f32.xlu0 %v187
        %v189 = vpop.xlane.xlu0 %188
        %v190 = vadd.f32 %v166, %v180
        %v191 = vadd.f32 %v167, %v183
        %v192 = vadd.f32 %v168, %v186
        %v193 = vadd.f32 %v169, %v189
        %vm194 = vcmask 7168
        %195 = vst.msk [vmem:[%s155] sm:$0xff] %vm194, %v190
        %196 = vst.msk [vmem:[%s155 + $0x8] sm:$0xff] %vm194, %v191
        %197 = vst.msk [vmem:[%s155 + $0x10] sm:$0xff] %vm194, %v192
        %198 = vst.msk [vmem:[%s155 + $0x18] sm:$0xff] %vm194, %v193
        %s199 = smul.u32 4, %s19
        %p200 = scmp.lt.s32.totalorder %s199, 7
        %s201 = scalar_select %p200, %s199, 7
        %s202 = smul.addr %s201, 8
        %s203 = scalar_lea.vmem %s1, %s202
        // Predicated region
        $region33: #{tpu_custom_call.1} parent=23 // pred_check
          %p204 = pneg %p73
        $region34: #{tpu_custom_call.1} parent=23 // pred_check_branch
          %206 = sbr.rel (%p204) target = $region36
        $region35: #{tpu_custom_call.1} parent=23 // pred_region
          %s207 = smul.u32 4, %s19
        $region36: #{tpu_custom_call.1} parent=23 // pred_fallthru
          _
      $region24: #{tpu_custom_call.1} parent=5 // pred_fallthru
        _
      %p208 = scmp.le.s32.totalorder 2, %s10
      // Predicated region
      $region37: #{tpu_custom_call.1} parent=5 // pred_check
        %p209 = pneg %p208
      $region38: #{tpu_custom_call.1} parent=5 // pred_check_branch
        %211 = sbr.rel (%p209) target = $region40
      $region39: #{tpu_custom_call.1} parent=5 // pred_region
        %s212 = ssub.s32 %s10, 2
        // Predicated region
        $region41: #{tpu_custom_call.1} parent=39 // pred_check
          %p213 = pneg %p79
        $region42: #{tpu_custom_call.1} parent=39 // pred_check_branch
          %215 = sbr.rel (%p213) target = $region44
        $region43: #{tpu_custom_call.1} parent=39 // pred_region
          %s216 = smul.u32 4, %s21
          %p217 = scmp.lt.s32.totalorder %s216, 7
          %s218 = scalar_select %p217, %s216, 7
          %s219 = smul.addr %s218, 8
          %s220 = scalar_lea.vmem %s1, %s219
        $region44: #{tpu_custom_call.1} parent=39 // pred_fallthru
          _
      $region40: #{tpu_custom_call.1} parent=5 // pred_fallthru
        _
    $region6: #{tpu_custom_call.1} parent=1 // loop_footer
      %s14 = sadd.s32 1, %s10
    $region7: #{tpu_custom_call.1} parent=1 // loop_footer_branch
      %9 = sbr.rel target = $region3
    $region8: #{tpu_custom_call.1} parent=1 // loop_exit
      _
    %221 = vsyncpa [#allocation3], 1
    %s222 = scalar_lea.sflag [#allocation3], 1
    %223 = vsyncpa %s222, 1

</llo_original>
